<compile_context>
chip_gen: v7x
topology: tpu7x:2x2x1
jax: 0.10.0
libtpu: 0.0.40
codegen_flags: <defaults>
</compile_context>

<pallas_src>
import functools

import jax
import jax.numpy as jnp
from jax.experimental import pallas as pl
from jax.experimental.pallas import tpu as pltpu

_LANES = 128
_INPUT_VMEM_BUDGET = 16 * 1024 * 1024   # double-buffered input footprint target
_VMEM_LIMIT_BYTES = 32 * 1024 * 1024    # explicit scoped-VMEM limit (safe on v5e..v7x)


def _composite_loss_kernel(x_ref, t_ref, out_ref, mse_acc, bce_acc, *,
                           w_mse, w_bce, tile_rows, acc_rows, steps, full_rows):
    s = pl.program_id(0)   # parallel split (TensorCore shard on 2-TC chips)
    i = pl.program_id(1)   # reduction step within this split

    @pl.when(i == 0)
    def _init():
        mse_acc[...] = jnp.zeros_like(mse_acc)
        bce_acc[...] = jnp.zeros_like(bce_acc)

    # Stream native-dtype tiles, upcast in-register.
    x = x_ref[...].astype(jnp.float32)
    t = t_ref[...].astype(jnp.float32)

    d = x - t
    sq = d * d
    # numerically stable BCE-with-logits: max(x,0) - x*t + log1p(exp(-|x|))
    bce = jnp.maximum(x, 0.0) - x * t + jnp.log1p(jnp.exp(-jnp.abs(x)))

    if acc_rows == 8:
        # (tr,128) -> (tr//8, 8, 128) is a tile-aligned view; the sum is a pure
        # tree of (8,128) vreg adds (no per-step sublane/XLU reduce).
        def _reduce(v):
            return jnp.sum(v.reshape(tile_rows // 8, 8, _LANES), axis=0)
    else:
        # Tiny-block fallback (tile_rows not a multiple of 8).
        def _reduce(v):
            return jnp.sum(v, axis=0, keepdims=True)

    # Logical (unclamped) global row offset of this block.
    row_start = (s * steps + i) * tile_rows
    fully_valid = row_start + tile_rows <= full_rows

    @pl.when(fully_valid)
    def _accumulate_full():
        mse_acc[...] += _reduce(sq)
        bce_acc[...] += _reduce(bce)

    @pl.when(jnp.logical_not(fully_valid))
    def _accumulate_tail():
        # Partial (or fully clamped-out) trailing block: mask invalid rows.
        rows_idx = row_start + jax.lax.broadcasted_iota(
            jnp.int32, (tile_rows, _LANES), 0)
        mask = rows_idx < full_rows
        mse_acc[...] += _reduce(jnp.where(mask, sq, 0.0))
        bce_acc[...] += _reduce(jnp.where(mask, bce, 0.0))

    @pl.when(i == steps - 1)
    def _finalize():
        combined = w_mse * mse_acc[...] + w_bce * bce_acc[...]   # (acc_rows, 128)
        out_ref[...] = combined.reshape(1, acc_rows, _LANES)


def _default_num_splits():
    # 2 TensorCores per chip on v4 / v5p / v7x; 1 on v5e / v6e.
    try:
        kind = jax.devices()[0].device_kind.lower()
        if ("v4" in kind) or ("v5p" in kind) or ("v7" in kind):
            return 2
    except Exception:
        pass
    return 1


def composite_loss(logits, targets, weights=(0.5, 1.0), *,
                   tile_rows=None, num_splits=None):
    assert logits.shape == targets.shape, "logits/targets shape mismatch"
    assert len(weights) == 2, "this instantiation uses two criterions"
    w_mse, w_bce = float(weights[0]), float(weights[1])

    n = int(logits.size)
    flat_x = logits.reshape(-1)
    flat_t = targets.reshape(-1)
    full_rows = n // _LANES
    rem = n - full_rows * _LANES

    # Lane remainder (< 128 elements): tiny JAX reduction instead of a full
    # jnp.pad copy of both inputs (which would double HBM traffic).
    tail = 0.0
    if rem:
        xt = flat_x[full_rows * _LANES:].astype(jnp.float32)
        tt = flat_t[full_rows * _LANES:].astype(jnp.float32)
        dt_ = xt - tt
        bce_t = jnp.maximum(xt, 0.0) - xt * tt + jnp.log1p(jnp.exp(-jnp.abs(xt)))
        tail = w_mse * jnp.sum(dt_ * dt_) + w_bce * jnp.sum(bce_t)

    if full_rows == 0:
        # Entire input is smaller than one lane row; nothing for the kernel.
        return tail * (1.0 / float(n))

    if rem:
        flat_x = flat_x[: full_rows * _LANES]
        flat_t = flat_t[: full_rows * _LANES]
    x2 = flat_x.reshape(full_rows, _LANES)   # native dtype, no upcast, no pad
    t2 = flat_t.reshape(full_rows, _LANES)

    # ---- tile size: double-buffered input footprint ~= _INPUT_VMEM_BUDGET ----
    if tile_rows is None:
        per_row_bytes = 2 * _LANES * (x2.dtype.itemsize + t2.dtype.itemsize)
        tile_rows = _INPUT_VMEM_BUDGET // per_row_bytes   # 8192 f32, 16384 bf16
    tr = int(tile_rows)
    if full_rows <= tr:
        tr = full_rows                       # one block == full array dims (always legal)
    else:
        tr = max(16, (tr // 16) * 16)        # sublane-aligned for f32 (8) and bf16 (16)

    if num_splits is None:
        num_splits = _default_num_splits()

    num_blocks = -(-full_rows // tr)
    splits = max(1, min(int(num_splits), num_blocks))
    steps = -(-num_blocks // splits)
    last_block = num_blocks - 1
    acc_rows = 8 if tr % 8 == 0 else 1

    if splits * steps == num_blocks:
        def in_map(s, i):
            return (s * steps + i, 0)
    else:
        # Rare overshoot: clamp so the extra step re-reads the last valid block;
        # its contribution is masked to zero inside the kernel.
        def in_map(s, i):
            return (jnp.minimum(s * steps + i, last_block), 0)

    kernel = functools.partial(
        _composite_loss_kernel,
        w_mse=w_mse,
        w_bce=w_bce,
        tile_rows=tr,
        acc_rows=acc_rows,
        steps=steps,
        full_rows=full_rows,
    )

    partials = pl.pallas_call(
        kernel,
        out_shape=jax.ShapeDtypeStruct((splits, acc_rows, _LANES), jnp.float32),
        grid_spec=pltpu.PrefetchScalarGridSpec(
            num_scalar_prefetch=0,
            grid=(splits, steps),
            in_specs=[
                pl.BlockSpec((tr, _LANES), in_map),
                pl.BlockSpec((tr, _LANES), in_map),
            ],
            out_specs=pl.BlockSpec((1, acc_rows, _LANES), lambda s, i: (s, 0, 0)),
            scratch_shapes=[
                pltpu.VMEM((acc_rows, _LANES), jnp.float32),
                pltpu.VMEM((acc_rows, _LANES), jnp.float32),
            ],
        ),
        compiler_params=pltpu.CompilerParams(
            dimension_semantics=("parallel", "arbitrary"),
            vmem_limit_bytes=_VMEM_LIMIT_BYTES,
        ),
    )(x2, t2)

    # Final cross-sublane / cross-lane / cross-split reduce + 'mean' normalization.
    return (jnp.sum(partials) + tail) * (1.0 / float(n))


def _reference_loss(logits, targets, weights=(0.5, 1.0)):
    x = logits.astype(jnp.float32)
    t = targets.astype(jnp.float32)
    mse = jnp.mean((x - t) ** 2)
    bce = jnp.mean(jnp.maximum(x, 0.0) - x * t + jnp.log1p(jnp.exp(-jnp.abs(x))))
    return weights[0] * mse + weights[1] * bce


if __name__ == "__main__":
    key = jax.random.PRNGKey(0)
    k1, k2, k3, k4, k5, k6 = jax.random.split(key, 6)

    loss_fn = jax.jit(lambda a, b: composite_loss(a, b, (0.5, 1.0)))

    # Test 1: f32, lane-divisible NCHW (primary spec shape).
    B, C, H, W = 2, 4, 16, 16
    logits = jax.random.normal(k1, (B, C, H, W), dtype=jnp.float32)
    targets = jax.random.uniform(k2, (B, C, H, W), dtype=jnp.float32)
    loss = jax.block_until_ready(loss_fn(logits, targets))
    ref = _reference_loss(logits, targets, (0.5, 1.0))
    assert jnp.allclose(loss, ref, rtol=1e-5, atol=1e-5), (loss, ref)

    # Test 2: f32, ragged element count (exercises the JAX lane-remainder path).
    logits2 = jax.random.normal(k3, (2, 3, 10, 10), dtype=jnp.float32)
    targets2 = jax.random.uniform(k4, (2, 3, 10, 10), dtype=jnp.float32)
    loss2 = jax.block_until_ready(loss_fn(logits2, targets2))
    ref2 = _reference_loss(logits2, targets2, (0.5, 1.0))
    assert jnp.allclose(loss2, ref2, rtol=1e-5, atol=1e-5), (loss2, ref2)

    # Test 3: bf16 inputs streamed at native width (no wrapper upcast).
    logits3 = logits.astype(jnp.bfloat16)
    targets3 = targets.astype(jnp.bfloat16)
    loss3 = jax.block_until_ready(loss_fn(logits3, targets3))
    ref3 = _reference_loss(logits3, targets3, (0.5, 1.0))
    assert jnp.allclose(loss3, ref3, rtol=1e-4, atol=1e-4), (loss3, ref3)

    # Test 4: multi-block grid with splits=2, partial trailing block, clamped
    # duplicate block, and a lane remainder (stress-test of all edge paths).
    loss_fn4 = jax.jit(lambda a, b: composite_loss(a, b, (0.5, 1.0),
                                                   tile_rows=16, num_splits=2))
    logits4 = jax.random.normal(k5, (3, 5, 17, 19), dtype=jnp.float32)
    targets4 = jax.random.uniform(k6, (3, 5, 17, 19), dtype=jnp.float32)
    loss4 = jax.block_until_ready(loss_fn4(logits4, targets4))
    ref4 = _reference_loss(logits4, targets4, (0.5, 1.0))
    assert jnp.allclose(loss4, ref4, rtol=1e-5, atol=1e-5), (loss4, ref4)

    print("KERNEL_OK")
</pallas_src>

<mosaic_0001>
module attributes {stable_mosaic.version = 11 : i64} {
  func.func @_composite_loss_kernel(%arg0: i32, %arg1: i32, %arg2: memref<16x128xf32, #tpu.memory_space<vmem>>, %arg3: memref<16x128xf32, #tpu.memory_space<vmem>>, %arg4: memref<1x8x128xf32, #tpu.memory_space<vmem>>, %arg5: memref<8x128xf32, #tpu.memory_space<vmem>>, %arg6: memref<8x128xf32, #tpu.memory_space<vmem>>) attributes {dimension_semantics = [#tpu.dimension_semantics<parallel>, #tpu.dimension_semantics<arbitrary>], iteration_bounds = array<i64: 1, 1>, scalar_prefetch = 0 : i64, scratch_operands = 2 : i64, tpu.core_type = #tpu.core_type<tc>, window_params = [{transform_indices = @transform_0, window_bounds = array<i64: 16, 128>}, {transform_indices = @transform_1, window_bounds = array<i64: 16, 128>}, {transform_indices = @transform_2, window_bounds = array<i64: 1, 8, 128>}]} {
    %c0_i32 = arith.constant 0 : i32
    %0 = arith.cmpi eq, %arg1, %c0_i32 : i32
    %1 = arith.extui %0 : i1 to i32
    %c0_i32_0 = arith.constant 0 : i32
    %2 = arith.cmpi ne, %1, %c0_i32_0 : i32
    scf.if %2 {
      %cst_11 = arith.constant 0.000000e+00 : f32
      %30 = vector.broadcast %cst_11 : f32 to vector<8x128xf32>
      %c0_12 = arith.constant 0 : index
      %c0_13 = arith.constant 0 : index
      %31 = vector.load %arg5[%c0_12, %c0_13] : memref<8x128xf32, #tpu.memory_space<vmem>>, vector<8x128xf32>
      tpu.vector_store %arg5[%c0_12, %c0_13], %30 {strides = array<i32>} : memref<8x128xf32, #tpu.memory_space<vmem>>, vector<8x128xf32>,
      %cst_14 = arith.constant 0.000000e+00 : f32
      %32 = vector.broadcast %cst_14 : f32 to vector<8x128xf32>
      %c0_15 = arith.constant 0 : index
      %c0_16 = arith.constant 0 : index
      %33 = vector.load %arg6[%c0_15, %c0_16] : memref<8x128xf32, #tpu.memory_space<vmem>>, vector<8x128xf32>
      tpu.vector_store %arg6[%c0_15, %c0_16], %32 {strides = array<i32>} : memref<8x128xf32, #tpu.memory_space<vmem>>, vector<8x128xf32>,
    } else {
    }
    %c0 = arith.constant 0 : index
    %c0_1 = arith.constant 0 : index
    %3 = vector.load %arg2[%c0, %c0_1] : memref<16x128xf32, #tpu.memory_space<vmem>>, vector<16x128xf32>
    %c0_2 = arith.constant 0 : index
    %c0_3 = arith.constant 0 : index
    %4 = vector.load %arg3[%c0_2, %c0_3] : memref<16x128xf32, #tpu.memory_space<vmem>>, vector<16x128xf32>
    %5 = arith.subf %3, %4 : vector<16x128xf32>
    %6 = arith.mulf %5, %5 : vector<16x128xf32>
    %cst = arith.constant 0.000000e+00 : f32
    %7 = vector.broadcast %cst : f32 to vector<16x128xf32>
    %8 = arith.maximumf %3, %7 : vector<16x128xf32>
    %9 = arith.mulf %3, %4 : vector<16x128xf32>
    %10 = arith.subf %8, %9 : vector<16x128xf32>
    %11 = math.absf %3 : vector<16x128xf32>
    %cst_4 = arith.constant 0.000000e+00 : f32
    %12 = vector.broadcast %cst_4 : f32 to vector<16x128xf32>
    %13 = arith.subf %12, %11 : vector<16x128xf32>
    %14 = math.exp %13 : vector<16x128xf32>
    %15 = math.log1p %14 : vector<16x128xf32>
    %16 = arith.addf %10, %15 : vector<16x128xf32>
    %c1_i32 = arith.constant 1 : i32
    %17 = arith.muli %arg0, %c1_i32 : i32
    %18 = arith.addi %17, %arg1 : i32
    %c16_i32 = arith.constant 16 : i32
    %19 = arith.muli %18, %c16_i32 : i32
    %c16_i32_5 = arith.constant 16 : i32
    %20 = arith.addi %19, %c16_i32_5 : i32
    %c16_i32_6 = arith.constant 16 : i32
    %21 = arith.cmpi sle, %20, %c16_i32_6 : i32
    %22 = arith.extui %21 : i1 to i32
    %c0_i32_7 = arith.constant 0 : i32
    %23 = arith.cmpi ne, %22, %c0_i32_7 : i32
    scf.if %23 {
      %c0_11 = arith.constant 0 : index
      %c0_12 = arith.constant 0 : index
      %30 = vector.load %arg5[%c0_11, %c0_12] : memref<8x128xf32, #tpu.memory_space<vmem>>, vector<8x128xf32>
      %31 = vector.shape_cast %6 : vector<16x128xf32> to vector<2x8x128xf32>
      %cst_13 = arith.constant dense<0.000000e+00> : vector<8x128xf32>
      %32 = vector.multi_reduction <add>, %31, %cst_13 [0] : vector<2x8x128xf32> to vector<8x128xf32>
      %33 = arith.addf %30, %32 : vector<8x128xf32>
      %c0_14 = arith.constant 0 : index
      %c0_15 = arith.constant 0 : index
      %34 = vector.load %arg5[%c0_14, %c0_15] : memref<8x128xf32, #tpu.memory_space<vmem>>, vector<8x128xf32>
      tpu.vector_store %arg5[%c0_14, %c0_15], %33 {strides = array<i32>} : memref<8x128xf32, #tpu.memory_space<vmem>>, vector<8x128xf32>,
      %c0_16 = arith.constant 0 : index
      %c0_17 = arith.constant 0 : index
      %35 = vector.load %arg6[%c0_16, %c0_17] : memref<8x128xf32, #tpu.memory_space<vmem>>, vector<8x128xf32>
      %36 = vector.shape_cast %16 : vector<16x128xf32> to vector<2x8x128xf32>
      %cst_18 = arith.constant dense<0.000000e+00> : vector<8x128xf32>
      %37 = vector.multi_reduction <add>, %36, %cst_18 [0] : vector<2x8x128xf32> to vector<8x128xf32>
      %38 = arith.addf %35, %37 : vector<8x128xf32>
      %c0_19 = arith.constant 0 : index
      %c0_20 = arith.constant 0 : index
      %39 = vector.load %arg6[%c0_19, %c0_20] : memref<8x128xf32, #tpu.memory_space<vmem>>, vector<8x128xf32>
      tpu.vector_store %arg6[%c0_19, %c0_20], %38 {strides = array<i32>} : memref<8x128xf32, #tpu.memory_space<vmem>>, vector<8x128xf32>,
    } else {
    }
    %true = arith.constant true
    %24 = arith.xori %21, %true : i1
    %25 = arith.extui %24 : i1 to i32
    %c0_i32_8 = arith.constant 0 : i32
    %26 = arith.cmpi ne, %25, %c0_i32_8 : i32
    scf.if %26 {
      %30 = tpu.iota {dimensions = array<i32: 0>} : vector<16x128xi32>
      %31 = vector.broadcast %19 : i32 to vector<16x128xi32>
      %32 = arith.addi %31, %30 : vector<16x128xi32>
      %c16_i32_11 = arith.constant 16 : i32
      %33 = vector.broadcast %c16_i32_11 : i32 to vector<16x128xi32>
      %34 = arith.cmpi slt, %32, %33 : vector<16x128xi32>
      %c0_12 = arith.constant 0 : index
      %c0_13 = arith.constant 0 : index
      %35 = vector.load %arg5[%c0_12, %c0_13] : memref<8x128xf32, #tpu.memory_space<vmem>>, vector<8x128xf32>
      %cst_14 = arith.constant 0.000000e+00 : f32
      %36 = vector.broadcast %cst_14 : f32 to vector<16x128xf32>
      %37 = arith.select %34, %6, %36 : vector<16x128xi1>, vector<16x128xf32>
      %38 = vector.shape_cast %37 : vector<16x128xf32> to vector<2x8x128xf32>
      %cst_15 = arith.constant dense<0.000000e+00> : vector<8x128xf32>
      %39 = vector.multi_reduction <add>, %38, %cst_15 [0] : vector<2x8x128xf32> to vector<8x128xf32>
      %40 = arith.addf %35, %39 : vector<8x128xf32>
      %c0_16 = arith.constant 0 : index
      %c0_17 = arith.constant 0 : index
      %41 = vector.load %arg5[%c0_16, %c0_17] : memref<8x128xf32, #tpu.memory_space<vmem>>, vector<8x128xf32>
      tpu.vector_store %arg5[%c0_16, %c0_17], %40 {strides = array<i32>} : memref<8x128xf32, #tpu.memory_space<vmem>>, vector<8x128xf32>,
      %c0_18 = arith.constant 0 : index
      %c0_19 = arith.constant 0 : index
      %42 = vector.load %arg6[%c0_18, %c0_19] : memref<8x128xf32, #tpu.memory_space<vmem>>, vector<8x128xf32>
      %cst_20 = arith.constant 0.000000e+00 : f32
      %43 = vector.broadcast %cst_20 : f32 to vector<16x128xf32>
      %44 = arith.select %34, %16, %43 : vector<16x128xi1>, vector<16x128xf32>
      %45 = vector.shape_cast %44 : vector<16x128xf32> to vector<2x8x128xf32>
      %cst_21 = arith.constant dense<0.000000e+00> : vector<8x128xf32>
      %46 = vector.multi_reduction <add>, %45, %cst_21 [0] : vector<2x8x128xf32> to vector<8x128xf32>
      %47 = arith.addf %42, %46 : vector<8x128xf32>
      %c0_22 = arith.constant 0 : index
      %c0_23 = arith.constant 0 : index
      %48 = vector.load %arg6[%c0_22, %c0_23] : memref<8x128xf32, #tpu.memory_space<vmem>>, vector<8x128xf32>
      tpu.vector_store %arg6[%c0_22, %c0_23], %47 {strides = array<i32>} : memref<8x128xf32, #tpu.memory_space<vmem>>, vector<8x128xf32>,
    } else {
    }
    %c0_i32_9 = arith.constant 0 : i32
    %27 = arith.cmpi eq, %arg1, %c0_i32_9 : i32
    %28 = arith.extui %27 : i1 to i32
    %c0_i32_10 = arith.constant 0 : i32
    %29 = arith.cmpi ne, %28, %c0_i32_10 : i32
    scf.if %29 {
      %c0_11 = arith.constant 0 : index
      %c0_12 = arith.constant 0 : index
      %30 = vector.load %arg5[%c0_11, %c0_12] : memref<8x128xf32, #tpu.memory_space<vmem>>, vector<8x128xf32>
      %cst_13 = arith.constant 5.000000e-01 : f32
      %31 = vector.broadcast %cst_13 : f32 to vector<8x128xf32>
      %32 = arith.mulf %31, %30 : vector<8x128xf32>
      %c0_14 = arith.constant 0 : index
      %c0_15 = arith.constant 0 : index
      %33 = vector.load %arg6[%c0_14, %c0_15] : memref<8x128xf32, #tpu.memory_space<vmem>>, vector<8x128xf32>
      %cst_16 = arith.constant 1.000000e+00 : f32
      %34 = vector.broadcast %cst_16 : f32 to vector<8x128xf32>
      %35 = arith.mulf %34, %33 : vector<8x128xf32>
      %36 = arith.addf %32, %35 : vector<8x128xf32>
      %37 = vector.shape_cast %36 : vector<8x128xf32> to vector<1x8x128xf32>
      %c0_17 = arith.constant 0 : index
      %c0_18 = arith.constant 0 : index
      %c0_19 = arith.constant 0 : index
      %38 = vector.load %arg4[%c0_17, %c0_18, %c0_19] : memref<1x8x128xf32, #tpu.memory_space<vmem>>, vector<1x8x128xf32>
      tpu.vector_store %arg4[%c0_17, %c0_18, %c0_19], %37 {strides = array<i32>} : memref<1x8x128xf32, #tpu.memory_space<vmem>>, vector<1x8x128xf32>,
    } else {
    }
    return
  }
  func.func @transform_0(%arg0: i32, %arg1: i32) -> (i32, i32) {
    %c1_i32 = arith.constant 1 : i32
    %0 = arith.muli %arg0, %c1_i32 : i32
    %1 = arith.addi %0, %arg1 : i32
    %c0_i32 = arith.constant 0 : i32
    %c0_i32_0 = arith.constant 0 : i32
    return %1, %c0_i32 : i32, i32
  }
  func.func @transform_1(%arg0: i32, %arg1: i32) -> (i32, i32) {
    %c1_i32 = arith.constant 1 : i32
    %0 = arith.muli %arg0, %c1_i32 : i32
    %1 = arith.addi %0, %arg1 : i32
    %c0_i32 = arith.constant 0 : i32
    %c0_i32_0 = arith.constant 0 : i32
    return %1, %c0_i32 : i32, i32
  }
  func.func @transform_2(%arg0: i32, %arg1: i32) -> (i32, i32, i32) {
    %c0_i32 = arith.constant 0 : i32
    %c0_i32_0 = arith.constant 0 : i32
    %c0_i32_1 = arith.constant 0 : i32
    return %arg0, %c0_i32, %c0_i32_0 : i32, i32, i32
  }
}

</mosaic_0001>

<llo_original>
// kernel: _lambda_.1
$region0: #{_lambda_.1}
  #allocation0 [shape = 'u32[]', space=smem, size = 0x4, offset = 0x4, fixed_abs, tag = 'smem constant byte address 0x4 - core index']
  #allocation1 [shape = 'u32[144,128]{1,0:T(1,128)}', space=vmem, size = 0x12000, scoped, tag = 'internal scratch']
  #allocation2 [shape = 'f32[8,128]{1,0:T(8,128)}', space=vmem, size = 0x1000, scoped, tag = 'scratch operand']
  #allocation3 [shape = 'f32[8,128]{1,0:T(8,128)}', space=vmem, size = 0x1000, scoped, tag = 'scratch operand']
  %s0 = inlined_call_operand.vmem [shape: f32[16,128], index: 0, kind: input, shape index: {}]
  %s1 = inlined_call_operand.vmem [shape: f32[16,128], index: 1, kind: input, shape index: {}]
  %s2 = inlined_call_operand.vmem [shape: f32[1,8,128], index: 2, kind: output, shape index: {}]
  %s3 = sld [smem:[#allocation0]]
  $region34: #{_lambda_.1} parent=0
    _
  %s5 = ssub.s32 1, %s3
  %s6 = scalar_select 0, %s5, %s3
  // Predicated region
  $region2: #{_lambda_.1} parent=0 // pred_check
    _
  $region3: #{_lambda_.1} parent=0 // pred_check_branch
    %8 = sbr.rel (0) target = $region5
  $region4: #{_lambda_.1} parent=0 // pred_region
    %s9 = sadd.s32 0, 0
    %s10 = smul.u32 2, %s9
    %p11 = scmp.lt.s32.totalorder %s10, 1
    %s12 = scalar_select %p11, %s10, 1
    %s13 = smul.addr %s12, 8
    %s14 = scalar_lea.vmem %s0, %s13
    %s15 = sadd.s32 0, 0
    %s16 = smul.u32 2, %s15
  $region5: #{_lambda_.1} parent=0 // pred_fallthru
    _
  // Predicated region
  $region6: #{_lambda_.1} parent=0 // pred_check
    _
  $region7: #{_lambda_.1} parent=0 // pred_check_branch
    %18 = sbr.rel (0) target = $region9
  $region8: #{_lambda_.1} parent=0 // pred_region
    %s19 = sadd.s32 0, 0
    %s20 = smul.u32 2, %s19
    %p21 = scmp.lt.s32.totalorder %s20, 1
    %s22 = scalar_select %p21, %s20, 1
    %s23 = smul.addr %s22, 8
    %s24 = scalar_lea.vmem %s1, %s23
    %s25 = sadd.s32 0, 0
    %s26 = smul.u32 2, %s25
  $region9: #{_lambda_.1} parent=0 // pred_fallthru
    _
  %s27 = sadd.s32 0, 0
  %s28 = smul.u32 2, %s27
  %p29 = scmp.lt.s32.totalorder %s28, 1
  %s30 = scalar_select %p29, %s28, 1
  %s31 = smul.addr %s30, 8
  %s32 = scalar_lea.vmem %s0, %s31
  %s33 = sadd.s32 0, 0
  %s34 = smul.u32 2, %s33
  %p35 = scmp.lt.s32.totalorder %s34, 1
  %s36 = scalar_select %p35, %s34, 1
  %s37 = smul.addr %s36, 8
  %s38 = scalar_lea.vmem %s1, %s37
  %s39 = sadd.s32 0, 0
  %s40 = smul.u32 2, %s39
  %p41 = scmp.lt.s32.totalorder %s40, 1
  %s42 = scalar_select %p41, %s40, 1
  %s43 = smul.addr %s42, 8
  %s44 = scalar_lea.vmem %s0, %s43
  %s45 = sadd.s32 0, 0
  %s46 = smul.u32 2, %s45
  %s47 = sadd.s32 0, 0
  %s48 = smul.u32 2, %s47
  %p49 = scmp.lt.s32.totalorder %s48, 1
  %s50 = scalar_select %p49, %s48, 1
  %s51 = smul.addr %s50, 8
  %s52 = scalar_lea.vmem %s1, %s51
  %s53 = sadd.s32 0, 0
  %s54 = smul.u32 2, %s53
  %p55 = scmp.eq.s32.totalorder 0, 0
  // Predicated region
  $region10: #{_lambda_.1} parent=0 // pred_check
    %p56 = pneg %p55
  $region11: #{_lambda_.1} parent=0 // pred_check_branch
    %58 = sbr.rel (%p56) target = $region13
  $region12: #{_lambda_.1} parent=0 // pred_region
    %59 = vst [vmem:[#allocation2] sm:$0xff] 0.0
    %60 = vst [vmem:[#allocation3] sm:$0xff] 0.0
  $region13: #{_lambda_.1} parent=0 // pred_fallthru
    _
  %v61 = vld [vmem:[%s44] sm:$0xff]
  %v62 = vld [vmem:[%s44 + $0x8] sm:$0xff]
  %v63 = vld [vmem:[%s52] sm:$0xff]
  %v64 = vld [vmem:[%s52 + $0x8] sm:$0xff]
  %v65 = vsub.f32 %v61, %v63
  %v66 = vsub.f32 %v62, %v64
  %v67 = vmul.f32 %v65, %v65
  %v68 = vmul.f32 %v66, %v66
  %v69 = vmax.f32 %v61, 0.0
  %v70 = vmax.f32 %v62, 0.0
  %v71 = vmul.f32 %v61, %v63
  %v72 = vmul.f32 %v62, %v64
  %v73 = vsub.f32 %v69, %v71
  %v74 = vsub.f32 %v70, %v72
  %v75 = vand.u32 2147483647, %v61
  %v76 = vand.u32 2147483647, %v62
  %v77 = vsub.f32 0.0, %v75
  %v78 = vsub.f32 0.0, %v76
  %v79 = vmul.f32 %v77, 1.442695
  %v80 = vpow.pop %v79
  %v81 = vmul.f32 %v78, 1.442695
  %v82 = vpow.pop %v81
  %v83 = vadd.f32 %v80, 1.0
  %v84 = vlog2.pop %v83
  %v85 = vmul.f32 %v84, 0.6931472
  %v86 = vmul.f32 -0.5, %v80
  %v87 = vadd.f32 %v86, 1.0
  %v88 = vmul.f32 %v87, %v80
  %v89 = vand.u32 2147483647, %v80
  %vm90 = vcmp.lt.f32.partialorder %v89, 0.0004427343
  %v91 = vsel %vm90, %v88, %v85
  %v92 = vadd.f32 %v82, 1.0
  %v93 = vlog2.pop %v92
  %v94 = vmul.f32 %v93, 0.6931472
  %v95 = vmul.f32 -0.5, %v82
  %v96 = vadd.f32 %v95, 1.0
  %v97 = vmul.f32 %v96, %v82
  %v98 = vand.u32 2147483647, %v82
  %vm99 = vcmp.lt.f32.partialorder %v98, 0.0004427343
  %v100 = vsel %vm99, %v97, %v94
  %v101 = vadd.f32 %v73, %v91
  %v102 = vadd.f32 %v74, %v100
  %s103 = sadd.s32 0, 0
  %s104 = smul.u32 %s103, 16
  %s105 = sadd.s32 %s104, 16
  %p106 = scmp.le.s32.totalorder %s105, 16
  // Predicated region
  $region14: #{_lambda_.1} parent=0 // pred_check
    %p107 = pneg %p106
  $region15: #{_lambda_.1} parent=0 // pred_check_branch
    %109 = sbr.rel (%p107) target = $region17
  $region16: #{_lambda_.1} parent=0 // pred_region
    %v110 = vld [vmem:[#allocation2] sm:$0xff]
    %v111 = vadd.f32 %v67, %v68
    %v112 = vadd.f32 %v110, %v111
    %113 = vst [vmem:[#allocation2] sm:$0xff] %v112
    %v114 = vld [vmem:[#allocation3] sm:$0xff]
    %v115 = vadd.f32 %v101, %v102
    %v116 = vadd.f32 %v114, %v115
    %117 = vst [vmem:[#allocation3] sm:$0xff] %v116
  $region17: #{_lambda_.1} parent=0 // pred_fallthru
    _
  %p118 = scmp.gt.s32.totalorder %s105, 16
  // Predicated region
  $region18: #{_lambda_.1} parent=0 // pred_check
    %p119 = pneg %p118
  $region19: #{_lambda_.1} parent=0 // pred_check_branch
    %121 = sbr.rel (%p119) target = $region21
  $region20: #{_lambda_.1} parent=0 // pred_region
    %v122 = vlaneseq
    %v123 = vshrl.u32 %v122, 7
    %v124 = vadd.s32 %v123, 8
    %v125 = vstv %s104
    %v126 = vadd.s32 %v125, %v123
    %v127 = vadd.s32 %v125, %v124
    %vm128 = vcmp.lt.s32.totalorder %v126, 16
    %vm129 = vcmp.lt.s32.totalorder %v127, 16
    %v130 = vld [vmem:[#allocation2] sm:$0xff]
    %v131 = vsel %vm128, %v67, 0.0
    %v132 = vsel %vm129, %v68, 0.0
    %v133 = vadd.f32 %v131, %v132
    %v134 = vadd.f32 %v130, %v133
    %135 = vst [vmem:[#allocation2] sm:$0xff] %v134
    %v136 = vld [vmem:[#allocation3] sm:$0xff]
    %v137 = vsel %vm128, %v101, 0.0
    %v138 = vsel %vm129, %v102, 0.0
    %v139 = vadd.f32 %v137, %v138
    %v140 = vadd.f32 %v136, %v139
    %141 = vst [vmem:[#allocation3] sm:$0xff] %v140
  $region21: #{_lambda_.1} parent=0 // pred_fallthru
    _
  // Predicated region
  $region22: #{_lambda_.1} parent=0 // pred_check
    %p142 = pneg %p55
  $region23: #{_lambda_.1} parent=0 // pred_check_branch
    %144 = sbr.rel (%p142) target = $region25
  $region24: #{_lambda_.1} parent=0 // pred_region
    %v145 = vld [vmem:[#allocation2] sm:$0xff]
    %v146 = vmul.f32 %v145, 0.5
    %v147 = vld [vmem:[#allocation3] sm:$0xff]
    %v148 = vadd.f32 %v146, %v147
    %149 = vst [vmem:[%s2] sm:$0xff] %v148
  $region25: #{_lambda_.1} parent=0 // pred_fallthru
    _
  // Predicated region
  $region26: #{_lambda_.1} parent=0 // pred_check
    _
  $region27: #{_lambda_.1} parent=0 // pred_check_branch
    %151 = sbr.rel (0) target = $region29
  $region28: #{_lambda_.1} parent=0 // pred_region
    _
  $region29: #{_lambda_.1} parent=0 // pred_fallthru
    _
  // Predicated region
  $region30: #{_lambda_.1} parent=0 // pred_check
    _
  $region31: #{_lambda_.1} parent=0 // pred_check_branch
    %153 = sbr.rel (0) target = $region33
  $region32: #{_lambda_.1} parent=0 // pred_region
    _
  $region33: #{_lambda_.1} parent=0 // pred_fallthru
    _

</llo_original>
